<compile_context>
chip_gen: v5e
topology: v5e:2x2
jax: 0.10.0
libtpu: 0.0.40
codegen_flags: <defaults>
</compile_context>

<pallas_src>
import jax
import jax.numpy as jnp
from jax import lax
from jax.experimental import pallas as pl
from jax.experimental.pallas import tpu as pltpu


def make_regression_kernel(T, B, H):
    FH = 4 * H               # gate width; 128 lanes when H == 32
    R_HDR = 0                # slab row offsets (all multiples of 8)
    R_WIH = 8
    R_WHH = R_WIH + H
    R_W2 = R_WHH + FH

    def kernel(x_ref, slab_ref, scal_ref, out_ref, xp_ref, acts_ref, h_ref, c_ref):
        # ---------------- unpack the packed weight slab ----------------
        header = slab_ref[pl.ds(R_HDR, 8), :]          # (8, FH)
        bias = header[0:1, :]                          # (1, FH)  b_ih+b_hh, [g,i,f,o]
        w1row = header[1:2, :]                         # (1, FH)  attn weight in h-lane group
        wih = slab_ref[pl.ds(R_WIH, H), :]             # (H, FH)  W_ih^T, permuted cols
        whh = slab_ref[pl.ds(R_WHH, FH), :]            # (FH, FH) W_hh^T padded (rows 3H:4H)
        w2p = slab_ref[pl.ds(R_W2, FH), :]             # (FH, FH) Linear_2 weight in col 0
        b1 = scal_ref[0]                               # attention-Linear bias (scalar)
        b2 = scal_ref[1]                               # regression-Linear bias (scalar)

        # ---------------- input projection hoisted out of the recurrence -------
        # x_ref is (T*B, H); one MXU matmul covers all timesteps, bias folded in.
        xp_ref[...] = (
            jnp.dot(x_ref[...], wih, preferred_element_type=jnp.float32) + bias
        )

        # ---------------- single-layer LSTM over time ----------------
        # Lane layout of the 4H gate vector: [g | i | f | o] (H lanes each).
        # c state lives in the f group (lanes [2H,3H)), h in the o group
        # (lanes [3H,4H)); other lanes carry bounded garbage that is ignored
        # because the corresponding weight rows / columns are zero.
        h_ref[...] = jnp.zeros_like(h_ref)
        c_ref[...] = jnp.zeros_like(c_ref)

        lane = lax.broadcasted_iota(jnp.int32, (B, FH), 1)
        is_g = lane < H                                      # g-gate lanes -> tanh
        half = jnp.where(is_g, jnp.float32(1.0), jnp.float32(0.5))  # loop-invariant

        @pl.loop(0, T)
        def _(t):
            row = pl.multiple_of(t * B, 8)
            gates = (xp_ref[pl.ds(row, B), :]
                     + jnp.dot(h_ref[...], whh, preferred_element_type=jnp.float32))
            # One tanh for all gates: sigmoid(z) = 0.5*(1 + tanh(z/2)).
            tg = jnp.tanh(gates * half)
            act = jnp.where(is_g, tg, 0.5 * tg + 0.5)
            # i*g lands in the i group after one lane-group roll
            ig = act * pltpu.roll(act, shift=H, axis=1)
            # c' = i*g + f*c   (in the f group)
            c_new = pltpu.roll(ig, shift=H, axis=1) + act * c_ref[...]
            # h' = o * tanh(c')   (in the o group)
            h_new = act * pltpu.roll(jnp.tanh(c_new), shift=H, axis=1)
            c_ref[...] = c_new
            h_ref[...] = h_new
            acts_ref[t] = h_new

        # ---------------- attention pooling over the batch dim ----------------
        acts = acts_ref[...]                                             # (T, B, FH)
        # w1row is zero outside the h lane group -> this equals acts_h @ w1 + b1
        logits = jnp.sum(acts * w1row[None, :, :], axis=-1, keepdims=True) + b1
        att = jnp.tanh(logits)                                           # (T, B, 1)
        ex = jnp.exp(att)                                                # bounded: |att|<=1
        denom = jnp.sum(ex, axis=1, keepdims=True)                       # (T, 1, 1)
        r = pl.reciprocal(denom, approx=True)
        r = r * (2.0 - denom * r)                                        # 1 Newton step -> f32 exact
        att = ex * r                                                     # softmax over dim=1
        sent = jnp.sum(acts * att, axis=1)                               # (T, FH)

        # ---------------- output projection (lane-dense, col 0 is the score) ----
        out_ref[...] = jnp.dot(sent, w2p, preferred_element_type=jnp.float32) + b2

    return kernel


def regression_forward(x, slab, scal, *, hid_dim):
    """x: (T, B, H) f32.  Returns regression_score (T, 1)."""
    T, B, H = x.shape
    assert H == hid_dim
    FH = 4 * H
    vmem = pl.BlockSpec(memory_space=pltpu.MemorySpace.VMEM)
    smem = pl.BlockSpec(memory_space=pltpu.MemorySpace.SMEM)
    out = pl.pallas_call(
        make_regression_kernel(T, B, H),
        out_shape=jax.ShapeDtypeStruct((T, FH), jnp.float32),
        in_specs=[vmem, vmem, smem],
        out_specs=vmem,
        scratch_shapes=[
            pltpu.VMEM((T * B, FH), jnp.float32),  # hoisted input projection + bias
            pltpu.VMEM((T, B, FH), jnp.float32),   # LSTM activations (h in lanes [3H,4H))
            pltpu.VMEM((B, FH), jnp.float32),      # h state
            pltpu.VMEM((B, FH), jnp.float32),      # c state
        ],
    )(x.reshape(T * B, H), slab, scal)
    return out[:, 0:1]


# --------------------------- host-side parameter prep ---------------------------

def init_params(key, hid_dim):
    """Deterministic synthetic parameters, shaped like the PyTorch module."""
    H = hid_dim
    k = 1.0 / jnp.sqrt(jnp.float32(H))

    def uni(key_, shape):
        return jax.random.uniform(key_, shape, jnp.float32, -k, k)

    ks = jax.random.split(key, 8)
    return {
        "hid_dim": H,
        "w_ih": uni(ks[0], (4 * H, H)),      # LSTM input weights, rows [i,f,g,o]
        "w_hh": uni(ks[1], (4 * H, H)),      # LSTM recurrent weights
        "b_ih": uni(ks[2], (4 * H,)),
        "b_hh": uni(ks[3], (4 * H,)),
        "w1": uni(ks[4], (1, H)),            # self.linear  (attention scorer)
        "b1": uni(ks[5], ()),
        "w2": uni(ks[6], (1, H)),            # self.linear2 (regression head)
        "b2": uni(ks[7], ()),
    }


def pack_params(p, hid_dim):
    """Pack everything into one lane-dense f32 slab + 2 SMEM scalars."""
    H = hid_dim
    FH = 4 * H

    def permute_gates(w):     # PyTorch [i,f,g,o] rows -> kernel [g,i,f,o] rows
        return jnp.concatenate(
            [w[2 * H:3 * H], w[0:H], w[H:2 * H], w[3 * H:4 * H]], axis=0)

    wih_t = jnp.transpose(permute_gates(p["w_ih"]))          # (H, FH)
    whh_t = jnp.transpose(permute_gates(p["w_hh"]))          # (H, FH)
    bias = permute_gates(p["b_ih"] + p["b_hh"])               # (FH,)

    header = jnp.zeros((8, FH), jnp.float32)
    header = header.at[0, :].set(bias)
    header = header.at[1, 3 * H:4 * H].set(p["w1"][0])        # attn weight -> h lane group

    whh_pad = jnp.zeros((FH, FH), jnp.float32).at[3 * H:4 * H, :].set(whh_t)
    w2_pad = jnp.zeros((FH, FH), jnp.float32).at[3 * H:4 * H, 0].set(p["w2"][0])

    slab = jnp.concatenate([header, wih_t, whh_pad, w2_pad], axis=0)   # (8+9H, FH)
    scal = jnp.stack([p["b1"], p["b2"]]).astype(jnp.float32)           # (2,)
    return slab, scal


# --------------------------- pure-JAX reference ---------------------------

def regression_ref(p, x):
    """Mirrors the PyTorch forward exactly (seq-first LSTM, softmax over dim=1)."""
    H = p["hid_dim"]
    T, B, _ = x.shape
    b = p["b_ih"] + p["b_hh"]

    def step(carry, x_t):
        h, c = carry
        gates = x_t @ p["w_ih"].T + h @ p["w_hh"].T + b
        i = jax.nn.sigmoid(gates[:, 0:H])
        f = jax.nn.sigmoid(gates[:, H:2 * H])
        g = jnp.tanh(gates[:, 2 * H:3 * H])
        o = jax.nn.sigmoid(gates[:, 3 * H:4 * H])
        c = f * c + i * g
        h = o * jnp.tanh(c)
        return (h, c), h

    init = (jnp.zeros((B, H), jnp.float32), jnp.zeros((B, H), jnp.float32))
    _, acts = lax.scan(step, init, x)                       # (T, B, H)

    att = jnp.tanh(acts @ p["w1"].T + p["b1"])[..., 0]      # (T, B)
    att = jax.nn.softmax(att, axis=1)
    sent = jnp.sum(acts * att[:, :, None], axis=1)          # (T, H)
    return sent @ p["w2"].T + p["b2"]                       # (T, 1)


if __name__ == "__main__":
    # Small shapes consistent with the module: seq=8, batch=8, hid_dim=32.
    T, B, H = 8, 8, 32

    root = jax.random.PRNGKey(0)
    k_param, k_x = jax.random.split(root)
    params = init_params(k_param, H)
    x = jax.random.normal(k_x, (T, B, H), jnp.float32)

    slab, scal = pack_params(params, H)
    score = regression_forward(x, slab, scal, hid_dim=H)
    jax.block_until_ready(score)

    score_ref = regression_ref(params, x)
    assert score.shape == (T, 1)
    assert jnp.allclose(score, score_ref, atol=1e-3, rtol=1e-3), \
        float(jnp.max(jnp.abs(score - score_ref)))

    print("KERNEL_OK")
</pallas_src>

<mosaic_0001>
module attributes {stable_mosaic.version = 11 : i64} {
  func.func @kernel(%arg0: memref<64x32xf32, #tpu.memory_space<vmem>>, %arg1: memref<296x128xf32, #tpu.memory_space<vmem>>, %arg2: memref<2xf32, #tpu.memory_space<smem>>, %arg3: memref<8x128xf32, #tpu.memory_space<vmem>>, %arg4: memref<64x128xf32, #tpu.memory_space<vmem>>, %arg5: memref<8x8x128xf32, #tpu.memory_space<vmem>>, %arg6: memref<8x128xf32, #tpu.memory_space<vmem>>, %arg7: memref<8x128xf32, #tpu.memory_space<vmem>>) attributes {dimension_semantics = [], scalar_prefetch = 0 : i64, scratch_operands = 4 : i64, tpu.core_type = #tpu.core_type<tc>} {
    %c0 = arith.constant 0 : index
    %c0_0 = arith.constant 0 : index
    %0 = vector.load %arg1[%c0, %c0_0] : memref<296x128xf32, #tpu.memory_space<vmem>>, vector<8x128xf32>
    %1 = vector.extract_strided_slice %0 {offsets = [0, 0], sizes = [1, 128], strides = [1, 1]} : vector<8x128xf32> to vector<1x128xf32>
    %2 = vector.extract_strided_slice %0 {offsets = [1, 0], sizes = [1, 128], strides = [1, 1]} : vector<8x128xf32> to vector<1x128xf32>
    %c8 = arith.constant 8 : index
    %c0_1 = arith.constant 0 : index
    %3 = vector.load %arg1[%c8, %c0_1] : memref<296x128xf32, #tpu.memory_space<vmem>>, vector<32x128xf32>
    %c40 = arith.constant 40 : index
    %c0_2 = arith.constant 0 : index
    %4 = vector.load %arg1[%c40, %c0_2] : memref<296x128xf32, #tpu.memory_space<vmem>>, vector<128x128xf32>
    %c168 = arith.constant 168 : index
    %c0_3 = arith.constant 0 : index
    %5 = vector.load %arg1[%c168, %c0_3] : memref<296x128xf32, #tpu.memory_space<vmem>>, vector<128x128xf32>
    %c0_4 = arith.constant 0 : index
    %6 = memref.load %arg2[%c0_4] : memref<2xf32, #tpu.memory_space<smem>>
    %c1 = arith.constant 1 : index
    %7 = memref.load %arg2[%c1] : memref<2xf32, #tpu.memory_space<smem>>
    %c0_5 = arith.constant 0 : index
    %c0_6 = arith.constant 0 : index
    %8 = vector.load %arg0[%c0_5, %c0_6] : memref<64x32xf32, #tpu.memory_space<vmem>>, vector<64x32xf32>
    %cst = arith.constant dense<0.000000e+00> : vector<64x128xf32>
    %9 = tpu.matmul %8, %3, %cst {dimension_numbers = #tpu.dot_dimension_numbers<[1], [0], [0], [1], [0, 0, 1, 1], [], []>} : vector<64x32xf32>, vector<32x128xf32>, vector<64x128xf32> -> vector<64x128xf32>
    %10 = vector.broadcast %1 : vector<1x128xf32> to vector<64x128xf32>
    %11 = arith.addf %9, %10 : vector<64x128xf32>
    %c0_7 = arith.constant 0 : index
    %c0_8 = arith.constant 0 : index
    %12 = vector.load %arg4[%c0_7, %c0_8] : memref<64x128xf32, #tpu.memory_space<vmem>>, vector<64x128xf32>
    tpu.vector_store %arg4[%c0_7, %c0_8], %11 {strides = array<i32>} : memref<64x128xf32, #tpu.memory_space<vmem>>, vector<64x128xf32>,
    %cst_9 = arith.constant 0.000000e+00 : f32
    %13 = vector.broadcast %cst_9 : f32 to vector<8x128xf32>
    %c0_10 = arith.constant 0 : index
    %c0_11 = arith.constant 0 : index
    %14 = vector.load %arg6[%c0_10, %c0_11] : memref<8x128xf32, #tpu.memory_space<vmem>>, vector<8x128xf32>
    tpu.vector_store %arg6[%c0_10, %c0_11], %13 {strides = array<i32>} : memref<8x128xf32, #tpu.memory_space<vmem>>, vector<8x128xf32>,
    %cst_12 = arith.constant 0.000000e+00 : f32
    %15 = vector.broadcast %cst_12 : f32 to vector<8x128xf32>
    %c0_13 = arith.constant 0 : index
    %c0_14 = arith.constant 0 : index
    %16 = vector.load %arg7[%c0_13, %c0_14] : memref<8x128xf32, #tpu.memory_space<vmem>>, vector<8x128xf32>
    tpu.vector_store %arg7[%c0_13, %c0_14], %15 {strides = array<i32>} : memref<8x128xf32, #tpu.memory_space<vmem>>, vector<8x128xf32>,
    %17 = tpu.iota {dimensions = array<i32: 1>} : vector<8x128xi32>
    %c32_i32 = arith.constant 32 : i32
    %18 = vector.broadcast %c32_i32 : i32 to vector<8x128xi32>
    %19 = arith.cmpi slt, %17, %18 : vector<8x128xi32>
    %cst_15 = arith.constant 1.000000e+00 : f32
    %cst_16 = arith.constant 5.000000e-01 : f32
    %20 = vector.broadcast %cst_15 : f32 to vector<8x128xf32>
    %21 = vector.broadcast %cst_16 : f32 to vector<8x128xf32>
    %22 = arith.select %19, %20, %21 : vector<8x128xi1>, vector<8x128xf32>
    %c0_i32 = arith.constant 0 : i32
    %c8_i32 = arith.constant 8 : i32
    %23 = arith.addi %c0_i32, %c8_i32 : i32
    %c1_i32 = arith.constant 1 : i32
    scf.for %arg8 = %c0_i32 to %23 step %c1_i32  : i32 {
      %c1_i32_28 = arith.constant 1 : i32
      %50 = arith.muli %arg8, %c1_i32_28 : i32
      %c0_i32_29 = arith.constant 0 : i32
      %51 = arith.addi %c0_i32_29, %50 : i32
      %c8_i32_30 = arith.constant 8 : i32
      %52 = arith.muli %51, %c8_i32_30 : i32
      %53 = tpu.assume_multiple %52, 8 : i32
      %54 = arith.index_cast %53 : i32 to index
      %c0_31 = arith.constant 0 : index
      %55 = vector.load %arg4[%54, %c0_31] : memref<64x128xf32, #tpu.memory_space<vmem>>, vector<8x128xf32>
      %c0_32 = arith.constant 0 : index
      %c0_33 = arith.constant 0 : index
      %56 = vector.load %arg6[%c0_32, %c0_33] : memref<8x128xf32, #tpu.memory_space<vmem>>, vector<8x128xf32>
      %cst_34 = arith.constant dense<0.000000e+00> : vector<8x128xf32>
      %57 = tpu.matmul %56, %4, %cst_34 {dimension_numbers = #tpu.dot_dimension_numbers<[1], [0], [0], [1], [0, 0, 1, 1], [], []>} : vector<8x128xf32>, vector<128x128xf32>, vector<8x128xf32> -> vector<8x128xf32>
      %58 = arith.addf %55, %57 : vector<8x128xf32>
      %59 = arith.mulf %58, %22 : vector<8x128xf32>
      %60 = math.tanh %59 : vector<8x128xf32>
      %cst_35 = arith.constant 5.000000e-01 : f32
      %61 = vector.broadcast %cst_35 : f32 to vector<8x128xf32>
      %62 = arith.mulf %61, %60 : vector<8x128xf32>
      %cst_36 = arith.constant 5.000000e-01 : f32
      %63 = vector.broadcast %cst_36 : f32 to vector<8x128xf32>
      %64 = arith.addf %62, %63 : vector<8x128xf32>
      %65 = arith.select %19, %60, %64 : vector<8x128xi1>, vector<8x128xf32>
      %c32_i32_37 = arith.constant 32 : i32
      %66 = tpu.dynamic_rotate %65 by %c32_i32_37 dim 1 : vector<8x128xf32>, i32 -> vector<8x128xf32>
      %67 = arith.mulf %65, %66 : vector<8x128xf32>
      %c32_i32_38 = arith.constant 32 : i32
      %68 = tpu.dynamic_rotate %67 by %c32_i32_38 dim 1 : vector<8x128xf32>, i32 -> vector<8x128xf32>
      %c0_39 = arith.constant 0 : index
      %c0_40 = arith.constant 0 : index
      %69 = vector.load %arg7[%c0_39, %c0_40] : memref<8x128xf32, #tpu.memory_space<vmem>>, vector<8x128xf32>
      %70 = arith.mulf %65, %69 : vector<8x128xf32>
      %71 = arith.addf %68, %70 : vector<8x128xf32>
      %72 = math.tanh %71 : vector<8x128xf32>
      %c32_i32_41 = arith.constant 32 : i32
      %73 = tpu.dynamic_rotate %72 by %c32_i32_41 dim 1 : vector<8x128xf32>, i32 -> vector<8x128xf32>
      %74 = arith.mulf %65, %73 : vector<8x128xf32>
      %c0_42 = arith.constant 0 : index
      %c0_43 = arith.constant 0 : index
      %75 = vector.load %arg7[%c0_42, %c0_43] : memref<8x128xf32, #tpu.memory_space<vmem>>, vector<8x128xf32>
      tpu.vector_store %arg7[%c0_42, %c0_43], %71 {strides = array<i32>} : memref<8x128xf32, #tpu.memory_space<vmem>>, vector<8x128xf32>,
      %c0_44 = arith.constant 0 : index
      %c0_45 = arith.constant 0 : index
      %76 = vector.load %arg6[%c0_44, %c0_45] : memref<8x128xf32, #tpu.memory_space<vmem>>, vector<8x128xf32>
      tpu.vector_store %arg6[%c0_44, %c0_45], %74 {strides = array<i32>} : memref<8x128xf32, #tpu.memory_space<vmem>>, vector<8x128xf32>,
      %77 = arith.index_cast %51 : i32 to index
      %c0_46 = arith.constant 0 : index
      %c0_47 = arith.constant 0 : index
      %78 = vector.load %arg5[%77, %c0_46, %c0_47] : memref<8x8x128xf32, #tpu.memory_space<vmem>>, vector<1x8x128xf32>
      %79 = vector.shape_cast %78 : vector<1x8x128xf32> to vector<8x128xf32>
      %80 = vector.shape_cast %74 : vector<8x128xf32> to vector<1x8x128xf32>
      tpu.vector_store %arg5[%77, %c0_46, %c0_47], %80 {strides = array<i32>} : memref<8x8x128xf32, #tpu.memory_space<vmem>>, vector<1x8x128xf32>,
    }
    %c8_i32_17 = arith.constant 8 : i32
    %c0_18 = arith.constant 0 : index
    %c0_19 = arith.constant 0 : index
    %c0_20 = arith.constant 0 : index
    %24 = vector.load %arg5[%c0_18, %c0_19, %c0_20] : memref<8x8x128xf32, #tpu.memory_space<vmem>>, vector<8x8x128xf32>
    %25 = vector.shape_cast %2 : vector<1x128xf32> to vector<1x1x128xf32>
    %26 = vector.broadcast %25 : vector<1x1x128xf32> to vector<8x8x128xf32>
    %27 = arith.mulf %24, %26 : vector<8x8x128xf32>
    %cst_21 = arith.constant dense<0.000000e+00> : vector<8x8xf32>
    %28 = vector.multi_reduction <add>, %27, %cst_21 [2] : vector<8x8x128xf32> to vector<8x8xf32>
    %29 = vector.shape_cast %28 : vector<8x8xf32> to vector<8x8x1xf32>
    %30 = vector.broadcast %6 : f32 to vector<8x8x1xf32>
    %31 = arith.addf %29, %30 : vector<8x8x1xf32>
    %32 = math.tanh %31 : vector<8x8x1xf32>
    %33 = math.exp %32 : vector<8x8x1xf32>
    %cst_22 = arith.constant dense<0.000000e+00> : vector<8x1xf32>
    %34 = vector.multi_reduction <add>, %33, %cst_22 [1] : vector<8x8x1xf32> to vector<8x1xf32>
    %35 = vector.shape_cast %34 : vector<8x1xf32> to vector<8x1x1xf32>
    %36 = tpu.reciprocal %35 {approx = true} : vector<8x1x1xf32> -> vector<8x1x1xf32>
    %37 = arith.mulf %35, %36 : vector<8x1x1xf32>
    %cst_23 = arith.constant 2.000000e+00 : f32
    %38 = vector.broadcast %cst_23 : f32 to vector<8x1x1xf32>
    %39 = arith.subf %38, %37 : vector<8x1x1xf32>
    %40 = arith.mulf %36, %39 : vector<8x1x1xf32>
    %41 = vector.broadcast %40 : vector<8x1x1xf32> to vector<8x8x1xf32>
    %42 = arith.mulf %33, %41 : vector<8x8x1xf32>
    %43 = vector.broadcast %42 : vector<8x8x1xf32> to vector<8x8x128xf32>
    %44 = arith.mulf %24, %43 : vector<8x8x128xf32>
    %cst_24 = arith.constant dense<0.000000e+00> : vector<8x128xf32>
    %45 = vector.multi_reduction <add>, %44, %cst_24 [1] : vector<8x8x128xf32> to vector<8x128xf32>
    %cst_25 = arith.constant dense<0.000000e+00> : vector<8x128xf32>
    %46 = tpu.matmul %45, %5, %cst_25 {dimension_numbers = #tpu.dot_dimension_numbers<[1], [0], [0], [1], [0, 0, 1, 1], [], []>} : vector<8x128xf32>, vector<128x128xf32>, vector<8x128xf32> -> vector<8x128xf32>
    %47 = vector.broadcast %7 : f32 to vector<8x128xf32>
    %48 = arith.addf %46, %47 : vector<8x128xf32>
    %c0_26 = arith.constant 0 : index
    %c0_27 = arith.constant 0 : index
    %49 = vector.load %arg3[%c0_26, %c0_27] : memref<8x128xf32, #tpu.memory_space<vmem>>, vector<8x128xf32>
    tpu.vector_store %arg3[%c0_26, %c0_27], %48 {strides = array<i32>} : memref<8x128xf32, #tpu.memory_space<vmem>>, vector<8x128xf32>,
    return
  }
}

</mosaic_0001>

<llo_original>
// kernel: tpu_custom_call.1
$region0: #{tpu_custom_call.1}
  #allocation0 [shape = 'u32[]', space=smem, size = 0x4, offset = 0x4, fixed_abs, tag = 'smem constant byte address 0x4 - core index']
  #allocation1 [shape = 'u32[72,128]{1,0:T(1,128)}', space=vmem, size = 0x9000, scoped, tag = 'internal scratch']
  #allocation2 [shape = 'f32[64,128]{1,0:T(8,128)}', space=vmem, size = 0x8000, scoped, tag = 'scratch operand']
  #allocation3 [shape = 'f32[8,8,128]{2,1,0:T(8,128)}', space=vmem, size = 0x8000, scoped, tag = 'scratch operand']
  #allocation4 [shape = 'f32[8,128]{1,0:T(8,128)}', space=vmem, size = 0x1000, scoped, tag = 'scratch operand']
  #allocation5 [shape = 'f32[8,128]{1,0:T(8,128)}', space=vmem, size = 0x1000, scoped, tag = 'scratch operand']
  %s0 = inlined_call_operand.vmem [shape: f32[64,32], index: 0, kind: input, shape index: {}]
  %s1 = inlined_call_operand.hbm [shape: f32[296,128], index: 1, kind: input, shape index: {}]
  %s2 = inlined_call_operand.vmem [shape: f32[2], index: 2, kind: input, shape index: {}]
  %s3 = inlined_call_operand.hbm [shape: f32[8,128], index: 3, kind: output, shape index: {}]
  %s4 = sld [smem:[#allocation0]]
  $region37: #{tpu_custom_call.1} parent=0
    _
  %s6 = ssub.s32 1, %s4
  %s7 = scalar_select 0, %s6, %s4
  $region1: #{tpu_custom_call.1} parent=0
    #allocation6 [shape = 'u8[151552]{0}', space=vmem, size = 0x25000, scoped, tag = 'input window, operand 1, single buffered']
    #allocation7 [shape = 's32[1]{0}', space=sflag, size = 0x4, scoped, tag = 'scoped memory for tpu_custom_call.1']
    #allocation8 [shape = 's32[1]{0}', space=sflag, size = 0x4, scoped, tag = 'scoped memory for tpu_custom_call.1']
    #allocation9 [shape = 's32[1]{0}', space=sflag, size = 0x4, scoped, tag = 'scoped memory for tpu_custom_call.1']
    #allocation10 [shape = 'u8[512]{0}', space=smem, size = 0x200, scoped, tag = 'input window, operand 2, single buffered']
    #allocation11 [shape = 'u8[4096]{0}', space=vmem, size = 0x1000, scoped, tag = 'output window, operand 0, single buffered']
    %8 = vsyncpa [#allocation7], 0
    %9 = vsyncpa [#allocation9], 0
    %10 = vsyncpa [#allocation8], 0
    // Predicated region
    $region2: #{tpu_custom_call.1} parent=1 // pred_check
      _
    $region3: #{tpu_custom_call.1} parent=1 // pred_check_branch
      %12 = sbr.rel (0) target = $region5
    $region4: #{tpu_custom_call.1} parent=1 // pred_region
      _
    $region5: #{tpu_custom_call.1} parent=1 // pred_fallthru
      _
    // Predicated region
    $region6: #{tpu_custom_call.1} parent=1 // pred_check
      _
    $region7: #{tpu_custom_call.1} parent=1 // pred_check_branch
      %14 = sbr.rel (0) target = $region9
    $region8: #{tpu_custom_call.1} parent=1 // pred_region
      %16 = vsyncadd [#allocation7], 0
      %s17 = sshll.u32 %s1, 4
      %s18 = int_to_ptr.hbm [resolvable:$true] %s17
      %s19 = sshll.u32 [#allocation6], 4
      %s20 = int_to_ptr.vmem [resolvable:$true] %s19
      %25 = dma.hbm_to_vmem [thread:$0]  %s18, 4736, %s20, [#allocation7], 128, 128, 8
    $region9: #{tpu_custom_call.1} parent=1 // pred_fallthru
      _
    // Predicated region
    $region10: #{tpu_custom_call.1} parent=1 // pred_check
      _
    $region11: #{tpu_custom_call.1} parent=1 // pred_check_branch
      %27 = sbr.rel (0) target = $region13
    $region12: #{tpu_custom_call.1} parent=1 // pred_region
      %29 = vsyncadd [#allocation9], 0
      %s31 = sshll.u32 %s2, 4
      %s32 = int_to_ptr.vmem [resolvable:$true] %s31
      %34 = dma.vmem_to_smem %s32, 16, [#allocation10], [#allocation9]
    $region13: #{tpu_custom_call.1} parent=1 // pred_fallthru
      _
    // Predicated region
    $region14: #{tpu_custom_call.1} parent=1 // pred_check
      _
    $region15: #{tpu_custom_call.1} parent=1 // pred_check_branch
      %36 = sbr.rel (0) target = $region17
    $region16: #{tpu_custom_call.1} parent=1 // pred_region
      %38 = dma.done [#allocation7], 4736
    $region17: #{tpu_custom_call.1} parent=1 // pred_fallthru
      _
    // Predicated region
    $region18: #{tpu_custom_call.1} parent=1 // pred_check
      _
    $region19: #{tpu_custom_call.1} parent=1 // pred_check_branch
      %40 = sbr.rel (0) target = $region21
    $region20: #{tpu_custom_call.1} parent=1 // pred_region
      %42 = dma.done [#allocation9], 16
    $region21: #{tpu_custom_call.1} parent=1 // pred_fallthru
      _
    %43 = sfence
    %v44 = vld [vmem:[#allocation6] sm:$0xff]
    %v45 = vld [vmem:[#allocation6 + $0x8] sm:$0xff]
    %v46 = vld [vmem:[#allocation6 + $0x10] sm:$0xff]
    %v47 = vld [vmem:[#allocation6 + $0x18] sm:$0xff]
    %v48 = vld [vmem:[#allocation6 + $0x20] sm:$0xff]
    %v49 = vld [vmem:[#allocation6 + $0x28] sm:$0xff]
    %v50 = vld [vmem:[#allocation6 + $0x30] sm:$0xff]
    %v51 = vld [vmem:[#allocation6 + $0x38] sm:$0xff]
    %v52 = vld [vmem:[#allocation6 + $0x40] sm:$0xff]
    %v53 = vld [vmem:[#allocation6 + $0x48] sm:$0xff]
    %v54 = vld [vmem:[#allocation6 + $0x50] sm:$0xff]
    %v55 = vld [vmem:[#allocation6 + $0x58] sm:$0xff]
    %v56 = vld [vmem:[#allocation6 + $0x60] sm:$0xff]
    %v57 = vld [vmem:[#allocation6 + $0x68] sm:$0xff]
    %v58 = vld [vmem:[#allocation6 + $0x70] sm:$0xff]
    %v59 = vld [vmem:[#allocation6 + $0x78] sm:$0xff]
    %v60 = vld [vmem:[#allocation6 + $0x80] sm:$0xff]
    %v61 = vld [vmem:[#allocation6 + $0x88] sm:$0xff]
    %v62 = vld [vmem:[#allocation6 + $0x90] sm:$0xff]
    %v63 = vld [vmem:[#allocation6 + $0x98] sm:$0xff]
    %v64 = vld [vmem:[#allocation6 + $0xa0] sm:$0xff]
    %v65 = vld [vmem:[#allocation6 + $0xa8] sm:$0xff]
    %v66 = vld [vmem:[#allocation6 + $0xb0] sm:$0xff]
    %v67 = vld [vmem:[#allocation6 + $0xb8] sm:$0xff]
    %v68 = vld [vmem:[#allocation6 + $0xc0] sm:$0xff]
    %v69 = vld [vmem:[#allocation6 + $0xc8] sm:$0xff]
    %v70 = vld [vmem:[#allocation6 + $0xd0] sm:$0xff]
    %v71 = vld [vmem:[#allocation6 + $0xd8] sm:$0xff]
    %v72 = vld [vmem:[#allocation6 + $0xe0] sm:$0xff]
    %v73 = vld [vmem:[#allocation6 + $0xe8] sm:$0xff]
    %v74 = vld [vmem:[#allocation6 + $0xf0] sm:$0xff]
    %v75 = vld [vmem:[#allocation6 + $0xf8] sm:$0xff]
    %v76 = vld [vmem:[#allocation6 + $0x100] sm:$0xff]
    %v77 = vld [vmem:[#allocation6 + $0x108] sm:$0xff]
    %v78 = vld [vmem:[#allocation6 + $0x110] sm:$0xff]
    %v79 = vld [vmem:[#allocation6 + $0x118] sm:$0xff]
    %v80 = vld [vmem:[#allocation6 + $0x120] sm:$0xff]
    %s81 = sld [smem:[#allocation10]]
    %s82 = sld [smem:[#allocation10 + $0x1]]
    %v83 = vld [vmem:[%s0] sm:$0xff]
    %v84 = vld [vmem:[%s0 + $0x8] sm:$0xff]
    %v85 = vld [vmem:[%s0 + $0x10] sm:$0xff]
    %v86 = vld [vmem:[%s0 + $0x18] sm:$0xff]
    %v87 = vld [vmem:[%s0 + $0x20] sm:$0xff]
    %v88 = vld [vmem:[%s0 + $0x28] sm:$0xff]
    %v89 = vld [vmem:[%s0 + $0x30] sm:$0xff]
    %v90 = vld [vmem:[%s0 + $0x38] sm:$0xff]
    %v91 = vperm.slane %v44, 0
    %vm92 = vcmask 261120
    %v94 = vsel %vm92, %v83, 0
    %v97 = vsel %vm92, %v84, 0
    %v100 = vsel %vm92, %v85, 0
    %v103 = vsel %vm92, %v86, 0
    %v106 = vsel %vm92, %v87, 0
    %v109 = vsel %vm92, %v88, 0
    %v112 = vsel %vm92, %v89, 0
    %v115 = vsel %vm92, %v90, 0
    %117 = vmatpush.msra.mxu0 0.0
    %118 = vmatpush.msra.mxu0 0.0
    %119 = vmatpush.msra.mxu0 0.0
    %120 = vmatpush.msra.mxu0 0.0
    %121 = vmatpush.msra.mxu0 0.0
    %122 = vmatpush.msra.mxu0 0.0
    %123 = vmatpush.msra.mxu0 0.0
    %124 = vmatpush.msra.mxu0 0.0
    %125 = vmatpush.msra.mxu0 0.0
    %126 = vmatpush.msra.mxu0 0.0
    %127 = vmatpush.msra.mxu0 0.0
    %128 = vmatpush.msra.mxu0 0.0
    %129 = vmatpush.msra.mxu0 %v48
    %130 = vmatpush.msra.mxu0 %v47
    %131 = vmatpush.msra.mxu0 %v46
    %132 = vmatpush.msra.mxu0 %v45
    %133 = vmatmul.f32.gmra.mxu0 %v94
    %v134 = vpop.f32.mrf.mxu0
    %v135 = vadd.f32 %v91, %v134
    %136 = vmatmul.f32.gmra.mxu0 %v97
    %v137 = vpop.f32.mrf.mxu0
    %v138 = vadd.f32 %v91, %v137
    %139 = vmatmul.f32.gmra.mxu0 %v100
    %v140 = vpop.f32.mrf.mxu0
    %v141 = vadd.f32 %v91, %v140
    %142 = vmatmul.f32.gmra.mxu0 %v103
    %v143 = vpop.f32.mrf.mxu0
    %v144 = vadd.f32 %v91, %v143
    %145 = vmatmul.f32.gmra.mxu0 %v106
    %v146 = vpop.f32.mrf.mxu0
    %v147 = vadd.f32 %v91, %v146
    %148 = vmatmul.f32.gmra.mxu0 %v109
    %v149 = vpop.f32.mrf.mxu0
    %v150 = vadd.f32 %v91, %v149
    %151 = vmatmul.f32.gmra.mxu0 %v112
    %v152 = vpop.f32.mrf.mxu0
    %v153 = vadd.f32 %v91, %v152
    %154 = vmatmul.f32.gmra.mxu0 %v115
    %v155 = vpop.f32.mrf.mxu0
    %v156 = vadd.f32 %v91, %v155
    %157 = vdwg.mxu0
    %158 = vst [vmem:[#allocation2] sm:$0xff] %v135
    %159 = vst [vmem:[#allocation2 + $0x8] sm:$0xff] %v138
    %160 = vst [vmem:[#allocation2 + $0x10] sm:$0xff] %v141
    %161 = vst [vmem:[#allocation2 + $0x18] sm:$0xff] %v144
    %162 = vst [vmem:[#allocation2 + $0x20] sm:$0xff] %v147
    %163 = vst [vmem:[#allocation2 + $0x28] sm:$0xff] %v150
    %164 = vst [vmem:[#allocation2 + $0x30] sm:$0xff] %v153
    %165 = vst [vmem:[#allocation2 + $0x38] sm:$0xff] %v156
    %166 = vst [vmem:[#allocation4] sm:$0xff] 0.0
    %167 = vst [vmem:[#allocation5] sm:$0xff] 0.0
    %v168 = vlaneseq
    %v169 = vand.u32 %v168, 127
    %vm170 = vcmp.lt.s32.totalorder %v169, 32
    %v171 = vsel %vm170, 1.0, 0.5
    loop: start=0, step=1, limit=8
    $region22: #{tpu_custom_call.1} parent=1 // loop_pre_header
      _
    $region23: #{tpu_custom_call.1} parent=1 // loop_header
      %s173 = sphi 0, %s177
      %p174 = scmp.ge.s32.totalorder %s173, 8
    $region24: #{tpu_custom_call.1} parent=1 // loop_header_branch
      %176 = sbr.rel (%p174) target = $region28
    $region25: #{tpu_custom_call.1} parent=1 // loop_body
      %s178 = smul.u32 %s173, 8
      %s179 = scalar_lea.vmem [#allocation2], %s178
      %v180 = vld [vmem:[%s179] sm:$0xff]
      %v181 = vld [vmem:[#allocation4] sm:$0xff]
      %182 = vmatpush.msra.mxu0 %v64
      %183 = vmatpush.msra.mxu0 %v63
      %184 = vmatpush.msra.mxu0 %v62
      %185 = vmatpush.msra.mxu0 %v61
      %186 = vmatpush.msra.mxu0 %v60
      %187 = vmatpush.msra.mxu0 %v59
      %188 = vmatpush.msra.mxu0 %v58
      %189 = vmatpush.msra.mxu0 %v57
      %190 = vmatpush.msra.mxu0 %v56
      %191 = vmatpush.msra.mxu0 %v55
      %192 = vmatpush.msra.mxu0 %v54
      %193 = vmatpush.msra.mxu0 %v53
      %194 = vmatpush.msra.mxu0 %v52
      %195 = vmatpush.msra.mxu0 %v51
      %196 = vmatpush.msra.mxu0 %v50
      %197 = vmatpush.msra.mxu0 %v49
      %198 = vmatmul.f32.gmra.mxu0 %v181
      %v199 = vpop.f32.mrf.mxu0
      %v200 = vadd.f32 0.0, %v199
      %201 = vdwg.mxu0
      %v202 = vadd.f32 %v180, %v200
      %v203 = vmul.f32 %v202, %v171
      %v204 = vtanh.pop %v203
      %v205 = vmul.f32 %v204, 0.5
      %v206 = vadd.f32 %v205, 0.5
      %v207 = vsel %vm170, %v204, %v206
      %208 = vrot.lane.b32.xlu0 %v207, 32
      %v209 = vpop.permute.xlu0 %208
      %v210 = vmul.f32 %v207, %v209
      %211 = vrot.lane.b32.xlu0 %v210, 32
      %v212 = vpop.permute.xlu0 %211
      %v213 = vld [vmem:[#allocation5] sm:$0xff]
      %v214 = vmul.f32 %v207, %v213
      %v215 = vadd.f32 %v212, %v214
      %v216 = vtanh.pop %v215
      %217 = vrot.lane.b32.xlu0 %v216, 32
      %v218 = vpop.permute.xlu0 %217
      %v219 = vmul.f32 %v207, %v218
      %220 = vst [vmem:[#allocation5] sm:$0xff] %v215
      %221 = vst [vmem:[#allocation4] sm:$0xff] %v219
      %s222 = scalar_lea.vmem [#allocation3], %s178
      %223 = vst [vmem:[%s222] sm:$0xff] %v219
    $region26: #{tpu_custom_call.1} parent=1 // loop_footer
      %s177 = sadd.s32 1, %s173
    $region27: #{tpu_custom_call.1} parent=1 // loop_footer_branch
      %172 = sbr.rel target = $region23
    $region28: #{tpu_custom_call.1} parent=1 // loop_exit
      _
    %v224 = vld [vmem:[#allocation3] sm:$0xff]
    %v225 = vld [vmem:[#allocation3 + $0x8] sm:$0xff]
    %v226 = vld [vmem:[#allocation3 + $0x10] sm:$0xff]
    %v227 = vld [vmem:[#allocation3 + $0x18] sm:$0xff]
    %v228 = vld [vmem:[#allocation3 + $0x20] sm:$0xff]
    %v229 = vld [vmem:[#allocation3 + $0x28] sm:$0xff]
    %v230 = vld [vmem:[#allocation3 + $0x30] sm:$0xff]
    %v231 = vld [vmem:[#allocation3 + $0x38] sm:$0xff]
    %v232 = vperm.slane %v44, 1
    %v233 = vmul.f32 %v224, %v232
    %v234 = vmul.f32 %v225, %v232
    %v235 = vmul.f32 %v226, %v232
    %v236 = vmul.f32 %v227, %v232
    %v237 = vmul.f32 %v228, %v232
    %v238 = vmul.f32 %v229, %v232
    %v239 = vmul.f32 %v230, %v232
    %v240 = vmul.f32 %v231, %v232
    %241 = vadd.xlane.f32.xlu0 %v233
    %v242 = vpop.xlane.xlu0 %241
    %243 = vadd.xlane.f32.xlu0 %v234
    %v244 = vpop.xlane.xlu0 %243
    %245 = vadd.xlane.f32.xlu0 %v235
    %v246 = vpop.xlane.xlu0 %245
    %247 = vadd.xlane.f32.xlu0 %v236
    %v248 = vpop.xlane.xlu0 %247
    %249 = vadd.xlane.f32.xlu0 %v237
    %v250 = vpop.xlane.xlu0 %249
    %251 = vadd.xlane.f32.xlu0 %v238
    %v252 = vpop.xlane.xlu0 %251
    %253 = vadd.xlane.f32.xlu0 %v239
    %v254 = vpop.xlane.xlu0 %253
    %255 = vadd.xlane.f32.xlu0 %v240
    %v256 = vpop.xlane.xlu0 %255
    %v257 = vstv %s81
    %v258 = vadd.f32 %v242, %v257
    %v259 = vadd.f32 %v244, %v257
    %v260 = vadd.f32 %v246, %v257
    %v261 = vadd.f32 %v248, %v257
    %v262 = vadd.f32 %v250, %v257
    %v263 = vadd.f32 %v252, %v257
    %v264 = vadd.f32 %v254, %v257
    %v265 = vadd.f32 %v256, %v257
    %v266 = vtanh.pop %v258
    %v267 = vtanh.pop %v259
    %v268 = vtanh.pop %v260
    %v269 = vtanh.pop %v261
    %v270 = vtanh.pop %v262
    %v271 = vtanh.pop %v263
    %v272 = vtanh.pop %v264
    %v273 = vtanh.pop %v265
    %v274 = vmul.f32 %v266, 1.442695
    %v275 = vpow.pop %v274
    %v276 = vmul.f32 %v267, 1.442695
    %v277 = vpow.pop %v276
    %v278 = vmul.f32 %v268, 1.442695
    %v279 = vpow.pop %v278
    %v280 = vmul.f32 %v269, 1.442695
    %v281 = vpow.pop %v280
    %v282 = vmul.f32 %v270, 1.442695
    %v283 = vpow.pop %v282
    %v284 = vmul.f32 %v271, 1.442695
    %v285 = vpow.pop %v284
    %v286 = vmul.f32 %v272, 1.442695
    %v287 = vpow.pop %v286
    %v288 = vmul.f32 %v273, 1.442695
    %v289 = vpow.pop %v288
    %v290 = vrot.slane %v275, 4
    %v291 = vadd.f32 %v275, %v290
    %v292 = vrot.slane %v291, 2
    %v293 = vadd.f32 %v291, %v292
    %v294 = vrot.slane %v293, 1
    %v295 = vadd.f32 %v293, %v294
    %v296 = vrot.slane %v277, 4
    %v297 = vadd.f32 %v277, %v296
    %v298 = vrot.slane %v297, 2
    %v299 = vadd.f32 %v297, %v298
    %v300 = vrot.slane %v299, 1
    %v301 = vadd.f32 %v299, %v300
    %v302 = vrot.slane %v279, 4
    %v303 = vadd.f32 %v279, %v302
    %v304 = vrot.slane %v303, 2
    %v305 = vadd.f32 %v303, %v304
    %v306 = vrot.slane %v305, 1
    %v307 = vadd.f32 %v305, %v306
    %v308 = vrot.slane %v281, 4
    %v309 = vadd.f32 %v281, %v308
    %v310 = vrot.slane %v309, 2
    %v311 = vadd.f32 %v309, %v310
    %v312 = vrot.slane %v311, 1
    %v313 = vadd.f32 %v311, %v312
    %v314 = vrot.slane %v283, 4
    %v315 = vadd.f32 %v283, %v314
    %v316 = vrot.slane %v315, 2
    %v317 = vadd.f32 %v315, %v316
    %v318 = vrot.slane %v317, 1
    %v319 = vadd.f32 %v317, %v318
    %v320 = vrot.slane %v285, 4
    %v321 = vadd.f32 %v285, %v320
    %v322 = vrot.slane %v321, 2
    %v323 = vadd.f32 %v321, %v322
    %v324 = vrot.slane %v323, 1
    %v325 = vadd.f32 %v323, %v324
    %v326 = vrot.slane %v287, 4
    %v327 = vadd.f32 %v287, %v326
    %v328 = vrot.slane %v327, 2
    %v329 = vadd.f32 %v327, %v328
    %v330 = vrot.slane %v329, 1
    %v331 = vadd.f32 %v329, %v330
    %v332 = vrot.slane %v289, 4
    %v333 = vadd.f32 %v289, %v332
    %v334 = vrot.slane %v333, 2
    %v335 = vadd.f32 %v333, %v334
    %v336 = vrot.slane %v335, 1
    %v337 = vadd.f32 %v335, %v336
    %v338 = vrcp.pop %v295
    %v339 = vrcp.pop %v301
    %v340 = vrcp.pop %v307
    %v341 = vrcp.pop %v313
    %v342 = vrcp.pop %v319
    %v343 = vrcp.pop %v325
    %v344 = vrcp.pop %v331
    %v345 = vrcp.pop %v337
    %v346 = vmul.f32 %v295, %v338
    %v347 = vmul.f32 %v301, %v339
    %v348 = vmul.f32 %v307, %v340
    %v349 = vmul.f32 %v313, %v341
    %v350 = vmul.f32 %v319, %v342
    %v351 = vmul.f32 %v325, %v343
    %v352 = vmul.f32 %v331, %v344
    %v353 = vmul.f32 %v337, %v345
    %v354 = vsub.f32 2.0, %v346
    %v355 = vsub.f32 2.0, %v347
    %v356 = vsub.f32 2.0, %v348
    %v357 = vsub.f32 2.0, %v349
    %v358 = vsub.f32 2.0, %v350
    %v359 = vsub.f32 2.0, %v351
    %v360 = vsub.f32 2.0, %v352
    %v361 = vsub.f32 2.0, %v353
    %v362 = vmul.f32 %v338, %v354
    %v363 = vmul.f32 %v339, %v355
    %v364 = vmul.f32 %v340, %v356
    %v365 = vmul.f32 %v341, %v357
    %v366 = vmul.f32 %v342, %v358
    %v367 = vmul.f32 %v343, %v359
    %v368 = vmul.f32 %v344, %v360
    %v369 = vmul.f32 %v345, %v361
    %v370 = vmul.f32 %v275, %v362
    %v371 = vmul.f32 %v277, %v363
    %v372 = vmul.f32 %v279, %v364
    %v373 = vmul.f32 %v281, %v365
    %v374 = vmul.f32 %v283, %v366
    %v375 = vmul.f32 %v285, %v367
    %v376 = vmul.f32 %v287, %v368
    %v377 = vmul.f32 %v289, %v369
    %v378 = vmul.f32 %v224, %v370
    %v379 = vmul.f32 %v225, %v371
    %v380 = vmul.f32 %v226, %v372
    %v381 = vmul.f32 %v227, %v373
    %v382 = vmul.f32 %v228, %v374
    %v383 = vmul.f32 %v229, %v375
    %v384 = vmul.f32 %v230, %v376
    %v385 = vmul.f32 %v231, %v377
    %v386 = vrot.slane %v378, 4
    %v387 = vadd.f32 %v378, %v386
    %v388 = vrot.slane %v387, 2
    %v389 = vadd.f32 %v387, %v388
    %v390 = vrot.slane %v389, 1
    %v391 = vadd.f32 %v389, %v390
    %v392 = vrot.slane %v379, 4
    %v393 = vadd.f32 %v379, %v392
    %v394 = vrot.slane %v393, 2
    %v395 = vadd.f32 %v393, %v394
    %v396 = vrot.slane %v395, 1
    %v397 = vadd.f32 %v395, %v396
    %v398 = vrot.slane %v380, 4
    %v399 = vadd.f32 %v380, %v398
    %v400 = vrot.slane %v399, 2
    %v401 = vadd.f32 %v399, %v400
    %v402 = vrot.slane %v401, 1
    %v403 = vadd.f32 %v401, %v402
    %v404 = vrot.slane %v381, 4
    %v405 = vadd.f32 %v381, %v404
    %v406 = vrot.slane %v405, 2
    %v407 = vadd.f32 %v405, %v406
    %v408 = vrot.slane %v407, 1
    %v409 = vadd.f32 %v407, %v408
    %v410 = vrot.slane %v382, 4
    %v411 = vadd.f32 %v382, %v410
    %v412 = vrot.slane %v411, 2
    %v413 = vadd.f32 %v411, %v412
    %v414 = vrot.slane %v413, 1
    %v415 = vadd.f32 %v413, %v414
    %v416 = vrot.slane %v383, 4
    %v417 = vadd.f32 %v383, %v416
    %v418 = vrot.slane %v417, 2
    %v419 = vadd.f32 %v417, %v418
    %v420 = vrot.slane %v419, 1
    %v421 = vadd.f32 %v419, %v420
    %v422 = vrot.slane %v384, 4
    %v423 = vadd.f32 %v384, %v422
    %v424 = vrot.slane %v423, 2
    %v425 = vadd.f32 %v423, %v424
    %v426 = vrot.slane %v425, 1
    %v427 = vadd.f32 %v425, %v426
    %v428 = vrot.slane %v385, 4
    %v429 = vadd.f32 %v385, %v428
    %v430 = vrot.slane %v429, 2
    %v431 = vadd.f32 %v429, %v430
    %v432 = vrot.slane %v431, 1
    %v433 = vadd.f32 %v431, %v432
    %v434 = vstv %s82
    %vm443 = vcmask 1041409
    %v444 = vsel %vm443, %v397, %v391
    %vm445 = vcmask 1042434
    %v446 = vsel %vm445, %v403, %v444
    %vm447 = vcmask 1043459
    %v448 = vsel %vm447, %v409, %v446
    %vm449 = vcmask 1044484
    %v450 = vsel %vm449, %v415, %v448
    %vm451 = vcmask 1045509
    %v452 = vsel %vm451, %v421, %v450
    %vm453 = vcmask 1046534
    %v454 = vsel %vm453, %v427, %v452
    %vm455 = vcmask 1047559
    %v456 = vsel %vm455, %v433, %v454
    %458 = vmatpush.msra.mxu0 %v80
    %459 = vmatpush.msra.mxu0 %v79
    %460 = vmatpush.msra.mxu0 %v78
    %461 = vmatpush.msra.mxu0 %v77
    %462 = vmatpush.msra.mxu0 %v76
    %463 = vmatpush.msra.mxu0 %v75
    %464 = vmatpush.msra.mxu0 %v74
    %465 = vmatpush.msra.mxu0 %v73
    %466 = vmatpush.msra.mxu0 %v72
    %467 = vmatpush.msra.mxu0 %v71
    %468 = vmatpush.msra.mxu0 %v70
    %469 = vmatpush.msra.mxu0 %v69
    %470 = vmatpush.msra.mxu0 %v68
    %471 = vmatpush.msra.mxu0 %v67
    %472 = vmatpush.msra.mxu0 %v66
    %473 = vmatpush.msra.mxu0 %v65
    %474 = vmatmul.f32.gmra.mxu0 %v456
    %v475 = vpop.f32.mrf.mxu0
    %v476 = vadd.f32 %v434, %v475
    %477 = vdwg.mxu0
    %478 = vst [vmem:[#allocation11] sm:$0xff] %v476
    // Predicated region
    $region29: #{tpu_custom_call.1} parent=1 // pred_check
      _
    $region30: #{tpu_custom_call.1} parent=1 // pred_check_branch
      %480 = sbr.rel (0) target = $region32
    $region31: #{tpu_custom_call.1} parent=1 // pred_region
      %482 = vsyncadd [#allocation8], 0
      %s484 = sshll.u32 [#allocation11], 4
      %s485 = int_to_ptr.vmem [resolvable:$true] %s484
      %s486 = sshll.u32 %s3, 4
      %s487 = int_to_ptr.hbm [resolvable:$true] %s486
      %489 = dma.vmem_to_hbm [thread:$0]  %s485, 128, %s487, [#allocation8]
    $region32: #{tpu_custom_call.1} parent=1 // pred_fallthru
      _
    // Predicated region
    $region33: #{tpu_custom_call.1} parent=1 // pred_check
      _
    $region34: #{tpu_custom_call.1} parent=1 // pred_check_branch
      %491 = sbr.rel (0) target = $region36
    $region35: #{tpu_custom_call.1} parent=1 // pred_region
      %493 = dma.done [#allocation8], 128
    $region36: #{tpu_custom_call.1} parent=1 // pred_fallthru
      _
    %494 = vsyncpa [#allocation7], 1
    %495 = vsyncpa [#allocation8], 1
    %496 = vsyncpa [#allocation9], 1

</llo_original>
